<compile_context>
chip_gen: v7x
topology: tpu7x:2x2x1
jax: 0.10.0
libtpu: 0.0.40
codegen_flags: <defaults>
</compile_context>

<pallas_src>
import jax
import jax.numpy as jnp
from jax import lax
from jax.experimental import pallas as pl
from jax.experimental.pallas import tpu as pltpu

_LANE = 128


def _round_up(x, m):
    return -(-x // m) * m


def _choose_tk(widths, b, itemsize, budget_bytes=8 * 1024 * 1024):
    """Largest power-of-two multiple of 128 lanes that (a) does not exceed the
    narrowest (128-padded) embedding width and (b) keeps the double-buffered
    input chunk within a conservative VMEM budget (v7x has only 64 MiB)."""
    min_w = min(_round_up(w, _LANE) for w in widths)
    tk = _LANE
    while (tk * 2 <= min_w and tk * 2 <= 2048
           and 2 * b * (tk * 2) * itemsize <= budget_bytes):
        tk *= 2
    return tk


def _rkd_fused_kernel(eid_ref, x_ref, loss_ref, acc_ref):
    """Grid axis = D-chunks of the concatenated embeddings.

    eid_ref : SMEM (num_chunks,) int32  -- chunk -> embedding id (scalar prefetch)
    x_ref   : VMEM (B, TK)              -- current input chunk (native dtype)
    loss_ref: SMEM (1,) f32             -- scalar loss output
    acc_ref : VMEM (n, B, B) f32        -- per-embedding raw Gram accumulators
    """
    k = pl.program_id(0)
    nk = pl.num_programs(0)
    n, b, _ = acc_ref.shape

    @pl.when(k == 0)
    def _init():
        acc_ref[...] = jnp.zeros_like(acc_ref)

    # Raw Gram contribution of this chunk: X_chunk @ X_chunk.T via dot_general
    # (contract dim 1 with dim 1 -> no explicit transpose / XLU copy).
    x = x_ref[...]
    g = lax.dot_general(x, x, (((1,), (1,)), ((), ())),
                        preferred_element_type=jnp.float32)   # (B, B) f32
    eid = eid_ref[k]
    acc_ref[eid] = acc_ref[eid] + g

    @pl.when(k == nk - 1)
    def _epilogue():
        # Diagonal extraction without a transpose (eye mask + reduce).
        rid = lax.broadcasted_iota(jnp.int32, (b, b), 0)
        cid = lax.broadcasted_iota(jnp.int32, (b, b), 1)
        eye = (rid == cid).astype(jnp.float32)

        def normalized(gr):
            # F.normalize(p=2, dim=1) folded onto the Gram output:
            #   Gn_ij = G_ij / (max(||x_i||,1e-12) * max(||x_j||,1e-12)),
            #   with ||x_i||^2 = G_ii (exactly, zero padding does not change it).
            d_col = jnp.sum(gr * eye, axis=1, keepdims=True)   # (B, 1)
            d_row = jnp.sum(gr * eye, axis=0, keepdims=True)   # (1, B)
            inv_c = 1.0 / jnp.maximum(jnp.sqrt(d_col), 1e-12)
            inv_r = 1.0 / jnp.maximum(jnp.sqrt(d_row), 1e-12)
            return gr * inv_c * inv_r

        gn = [normalized(acc_ref[i]) for i in range(n)]

        # sum_{i,j} ||G_i - G_j||_F^2 via explicit pairwise differences
        # (well-conditioned; avoids the 2n*sum||G||^2 - 2||sum G||^2 cancellation).
        total = jnp.float32(0.0)
        for i in range(n):
            for j in range(i + 1, n):
                d = gn[i] - gn[j]
                total = total + 2.0 * jnp.sum(d * d)

        loss_ref[0] = total / jnp.float32(b * b) / jnp.float32(n * n)


@jax.jit
def rkd_loss(*s_embeddings):
    """Fused RKDLoss forward. Accepts any number of embedding tensors; each is
    flattened to (B, -1). All must share batch size and dtype."""
    # NOTE: pdist / s_relation and DistillKL in the reference forward never
    # influence the returned loss (dead code) and are intentionally omitted.
    n = len(s_embeddings)
    flats = [e.reshape(e.shape[0], -1) for e in s_embeddings]
    b = flats[0].shape[0]
    dtype = flats[0].dtype
    for f in flats:
        assert f.shape[0] == b and f.dtype == dtype

    tk = _choose_tk([f.shape[1] for f in flats], b, dtype.itemsize)

    pieces, eids = [], []
    for i, f in enumerate(flats):
        w = _round_up(f.shape[1], tk)
        if w != f.shape[1]:
            f = jnp.pad(f, ((0, 0), (0, w - f.shape[1])))  # zeros don't change X @ X.T
        pieces.append(f)
        eids.extend([i] * (w // tk))
    x_cat = pieces[0] if n == 1 else jnp.concatenate(pieces, axis=1)
    chunk_eid = jnp.asarray(eids, dtype=jnp.int32)
    num_chunks = len(eids)

    # Explicit scoped-VMEM limit (keeps headroom on v7x's 64 MiB VMEM).
    vmem_need = 2 * b * tk * dtype.itemsize + n * b * b * 4
    vmem_limit = int(min(max(2 * vmem_need, 8 << 20), 32 << 20))

    # TODO(synk): for B >= 128 add a row-parallel ("parallel") grid axis so the
    # two v7x TensorCores split the Gram rows; needs a cross-row norm exchange.
    out = pl.pallas_call(
        _rkd_fused_kernel,
        out_shape=jax.ShapeDtypeStruct((1,), jnp.float32),
        grid_spec=pltpu.PrefetchScalarGridSpec(
            num_scalar_prefetch=1,
            grid=(num_chunks,),
            in_specs=[pl.BlockSpec((b, tk), lambda k, eid: (0, k))],
            out_specs=pl.BlockSpec(memory_space=pltpu.MemorySpace.SMEM),
            scratch_shapes=[pltpu.VMEM((n, b, b), jnp.float32)],
        ),
        compiler_params=pltpu.CompilerParams(
            dimension_semantics=("arbitrary",),
            vmem_limit_bytes=vmem_limit,
        ),
    )(chunk_eid, x_cat)
    return out[0]


if __name__ == "__main__":
    key = jax.random.PRNGKey(0)
    k1, k2, k3 = jax.random.split(key, 3)
    B = 8
    # A list of feature maps / embeddings, as the module expects (NCHW + flat).
    x1 = jax.random.normal(k1, (B, 4, 8, 8), dtype=jnp.float32)   # -> (8, 256)
    x2 = jax.random.normal(k2, (B, 8, 4, 4), dtype=jnp.float32)   # -> (8, 128)
    x3 = jax.random.normal(k3, (B, 32), dtype=jnp.float32)        # -> (8, 32)

    loss = rkd_loss(x1, x2, x3)
    jax.block_until_ready(loss)
    assert loss.shape == () and loss.dtype == jnp.float32

    # Plain-JAX reference of the (non-dead-code) forward for a sanity check.
    def _ref(*es):
        gs = []
        for e in es:
            f = e.reshape(e.shape[0], -1)
            nrm = jnp.maximum(jnp.linalg.norm(f, axis=1, keepdims=True), 1e-12)
            fn = f / nrm
            gs.append(fn @ fn.T)
        m = len(gs)
        tot = 0.0
        for i in range(m):
            for j in range(m):
                tot = tot + jnp.mean((gs[i] - gs[j]) ** 2)
        return tot / (m * m)

    ref_val = _ref(x1, x2, x3)
    assert jnp.allclose(loss, ref_val, rtol=1e-4, atol=1e-6), (loss, ref_val)
    print("KERNEL_OK")
</pallas_src>

<mosaic_0001>
module attributes {stable_mosaic.version = 11 : i64} {
  func.func @_rkd_fused_kernel(%arg0: i32, %arg1: memref<4xi32, #tpu.memory_space<smem>>, %arg2: memref<8x128xf32, #tpu.memory_space<vmem>>, %arg3: memref<1xf32, #tpu.memory_space<smem>>, %arg4: memref<3x8x8xf32, #tpu.memory_space<vmem>>) attributes {dimension_semantics = [#tpu.dimension_semantics<arbitrary>], iteration_bounds = array<i64: 4>, scalar_prefetch = 1 : i64, scratch_operands = 1 : i64, tpu.core_type = #tpu.core_type<tc>, window_params = [{transform_indices = @transform_0, window_bounds = array<i64: 8, 128>}, {transform_indices = @transform_1, window_bounds = array<i64: 1>}]} {
    %c0_i32 = arith.constant 0 : i32
    %0 = arith.cmpi eq, %arg0, %c0_i32 : i32
    %1 = arith.extui %0 : i1 to i32
    %c0_i32_0 = arith.constant 0 : i32
    %2 = arith.cmpi ne, %1, %c0_i32_0 : i32
    scf.if %2 {
      %cst_7 = arith.constant 0.000000e+00 : f32
      %18 = vector.broadcast %cst_7 : f32 to vector<3x8x8xf32>
      %c0_8 = arith.constant 0 : index
      %c0_9 = arith.constant 0 : index
      %c0_10 = arith.constant 0 : index
      %19 = vector.load %arg4[%c0_8, %c0_9, %c0_10] : memref<3x8x8xf32, #tpu.memory_space<vmem>>, vector<3x8x8xf32>
      tpu.vector_store %arg4[%c0_8, %c0_9, %c0_10], %18 {strides = array<i32>} : memref<3x8x8xf32, #tpu.memory_space<vmem>>, vector<3x8x8xf32>,
    } else {
    }
    %c0 = arith.constant 0 : index
    %c0_1 = arith.constant 0 : index
    %3 = vector.load %arg2[%c0, %c0_1] : memref<8x128xf32, #tpu.memory_space<vmem>>, vector<8x128xf32>
    %cst = arith.constant dense<0.000000e+00> : vector<8x8xf32>
    %4 = tpu.matmul %3, %3, %cst {dimension_numbers = #tpu.dot_dimension_numbers<[1], [1], [0], [0], [0, 0, 1, 0], [], []>} : vector<8x128xf32>, vector<8x128xf32>, vector<8x8xf32> -> vector<8x8xf32>
    %5 = arith.index_cast %arg0 : i32 to index
    %6 = memref.load %arg1[%5] : memref<4xi32, #tpu.memory_space<smem>>
    %7 = arith.index_cast %6 : i32 to index
    %c0_2 = arith.constant 0 : index
    %c0_3 = arith.constant 0 : index
    %8 = vector.load %arg4[%7, %c0_2, %c0_3] : memref<3x8x8xf32, #tpu.memory_space<vmem>>, vector<1x8x8xf32>
    %9 = vector.shape_cast %8 : vector<1x8x8xf32> to vector<8x8xf32>
    %10 = arith.addf %9, %4 : vector<8x8xf32>
    %11 = arith.index_cast %6 : i32 to index
    %c0_4 = arith.constant 0 : index
    %c0_5 = arith.constant 0 : index
    %12 = vector.load %arg4[%11, %c0_4, %c0_5] : memref<3x8x8xf32, #tpu.memory_space<vmem>>, vector<1x8x8xf32>
    %13 = vector.shape_cast %12 : vector<1x8x8xf32> to vector<8x8xf32>
    %14 = vector.shape_cast %10 : vector<8x8xf32> to vector<1x8x8xf32>
    tpu.vector_store %arg4[%11, %c0_4, %c0_5], %14 {strides = array<i32>} : memref<3x8x8xf32, #tpu.memory_space<vmem>>, vector<1x8x8xf32>,
    %c3_i32 = arith.constant 3 : i32
    %15 = arith.cmpi eq, %arg0, %c3_i32 : i32
    %16 = arith.extui %15 : i1 to i32
    %c0_i32_6 = arith.constant 0 : i32
    %17 = arith.cmpi ne, %16, %c0_i32_6 : i32
    scf.if %17 {
      %18 = tpu.iota {dimensions = array<i32: 0>} : vector<8x8xi32>
      %19 = tpu.iota {dimensions = array<i32: 1>} : vector<8x8xi32>
      %20 = arith.cmpi eq, %18, %19 : vector<8x8xi32>
      %21 = arith.extui %20 : vector<8x8xi1> to vector<8x8xi32>
      %22 = arith.sitofp %21 : vector<8x8xi32> to vector<8x8xf32>
      %c0_7 = arith.constant 0 : index
      %c0_8 = arith.constant 0 : index
      %c0_9 = arith.constant 0 : index
      %23 = vector.load %arg4[%c0_7, %c0_8, %c0_9] : memref<3x8x8xf32, #tpu.memory_space<vmem>>, vector<1x8x8xf32>
      %24 = vector.shape_cast %23 : vector<1x8x8xf32> to vector<8x8xf32>
      %25 = arith.mulf %24, %22 : vector<8x8xf32>
      %cst_10 = arith.constant dense<0.000000e+00> : vector<8xf32>
      %26 = vector.multi_reduction <add>, %25, %cst_10 [1] : vector<8x8xf32> to vector<8xf32>
      %27 = vector.shape_cast %26 : vector<8xf32> to vector<8x1xf32>
      %28 = arith.mulf %24, %22 : vector<8x8xf32>
      %cst_11 = arith.constant dense<0.000000e+00> : vector<8xf32>
      %29 = vector.multi_reduction <add>, %28, %cst_11 [0] : vector<8x8xf32> to vector<8xf32>
      %30 = vector.shape_cast %29 : vector<8xf32> to vector<1x8xf32>
      %31 = math.sqrt %27 : vector<8x1xf32>
      %cst_12 = arith.constant 9.99999996E-13 : f32
      %32 = vector.broadcast %cst_12 : f32 to vector<8x1xf32>
      %33 = arith.maximumf %31, %32 : vector<8x1xf32>
      %cst_13 = arith.constant 1.000000e+00 : f32
      %34 = vector.broadcast %cst_13 : f32 to vector<8x1xf32>
      %35 = arith.divf %34, %33 : vector<8x1xf32>
      %36 = math.sqrt %30 : vector<1x8xf32>
      %cst_14 = arith.constant 9.99999996E-13 : f32
      %37 = vector.broadcast %cst_14 : f32 to vector<1x8xf32>
      %38 = arith.maximumf %36, %37 : vector<1x8xf32>
      %cst_15 = arith.constant 1.000000e+00 : f32
      %39 = vector.broadcast %cst_15 : f32 to vector<1x8xf32>
      %40 = arith.divf %39, %38 : vector<1x8xf32>
      %41 = vector.broadcast %35 : vector<8x1xf32> to vector<8x8xf32>
      %42 = arith.mulf %24, %41 : vector<8x8xf32>
      %43 = vector.broadcast %40 : vector<1x8xf32> to vector<8x8xf32>
      %44 = arith.mulf %42, %43 : vector<8x8xf32>
      %c1 = arith.constant 1 : index
      %c0_16 = arith.constant 0 : index
      %c0_17 = arith.constant 0 : index
      %45 = vector.load %arg4[%c1, %c0_16, %c0_17] : memref<3x8x8xf32, #tpu.memory_space<vmem>>, vector<1x8x8xf32>
      %46 = vector.shape_cast %45 : vector<1x8x8xf32> to vector<8x8xf32>
      %47 = arith.mulf %46, %22 : vector<8x8xf32>
      %cst_18 = arith.constant dense<0.000000e+00> : vector<8xf32>
      %48 = vector.multi_reduction <add>, %47, %cst_18 [1] : vector<8x8xf32> to vector<8xf32>
      %49 = vector.shape_cast %48 : vector<8xf32> to vector<8x1xf32>
      %50 = arith.mulf %46, %22 : vector<8x8xf32>
      %cst_19 = arith.constant dense<0.000000e+00> : vector<8xf32>
      %51 = vector.multi_reduction <add>, %50, %cst_19 [0] : vector<8x8xf32> to vector<8xf32>
      %52 = vector.shape_cast %51 : vector<8xf32> to vector<1x8xf32>
      %53 = math.sqrt %49 : vector<8x1xf32>
      %cst_20 = arith.constant 9.99999996E-13 : f32
      %54 = vector.broadcast %cst_20 : f32 to vector<8x1xf32>
      %55 = arith.maximumf %53, %54 : vector<8x1xf32>
      %cst_21 = arith.constant 1.000000e+00 : f32
      %56 = vector.broadcast %cst_21 : f32 to vector<8x1xf32>
      %57 = arith.divf %56, %55 : vector<8x1xf32>
      %58 = math.sqrt %52 : vector<1x8xf32>
      %cst_22 = arith.constant 9.99999996E-13 : f32
      %59 = vector.broadcast %cst_22 : f32 to vector<1x8xf32>
      %60 = arith.maximumf %58, %59 : vector<1x8xf32>
      %cst_23 = arith.constant 1.000000e+00 : f32
      %61 = vector.broadcast %cst_23 : f32 to vector<1x8xf32>
      %62 = arith.divf %61, %60 : vector<1x8xf32>
      %63 = vector.broadcast %57 : vector<8x1xf32> to vector<8x8xf32>
      %64 = arith.mulf %46, %63 : vector<8x8xf32>
      %65 = vector.broadcast %62 : vector<1x8xf32> to vector<8x8xf32>
      %66 = arith.mulf %64, %65 : vector<8x8xf32>
      %c2 = arith.constant 2 : index
      %c0_24 = arith.constant 0 : index
      %c0_25 = arith.constant 0 : index
      %67 = vector.load %arg4[%c2, %c0_24, %c0_25] : memref<3x8x8xf32, #tpu.memory_space<vmem>>, vector<1x8x8xf32>
      %68 = vector.shape_cast %67 : vector<1x8x8xf32> to vector<8x8xf32>
      %69 = arith.mulf %68, %22 : vector<8x8xf32>
      %cst_26 = arith.constant dense<0.000000e+00> : vector<8xf32>
      %70 = vector.multi_reduction <add>, %69, %cst_26 [1] : vector<8x8xf32> to vector<8xf32>
      %71 = vector.shape_cast %70 : vector<8xf32> to vector<8x1xf32>
      %72 = arith.mulf %68, %22 : vector<8x8xf32>
      %cst_27 = arith.constant dense<0.000000e+00> : vector<8xf32>
      %73 = vector.multi_reduction <add>, %72, %cst_27 [0] : vector<8x8xf32> to vector<8xf32>
      %74 = vector.shape_cast %73 : vector<8xf32> to vector<1x8xf32>
      %75 = math.sqrt %71 : vector<8x1xf32>
      %cst_28 = arith.constant 9.99999996E-13 : f32
      %76 = vector.broadcast %cst_28 : f32 to vector<8x1xf32>
      %77 = arith.maximumf %75, %76 : vector<8x1xf32>
      %cst_29 = arith.constant 1.000000e+00 : f32
      %78 = vector.broadcast %cst_29 : f32 to vector<8x1xf32>
      %79 = arith.divf %78, %77 : vector<8x1xf32>
      %80 = math.sqrt %74 : vector<1x8xf32>
      %cst_30 = arith.constant 9.99999996E-13 : f32
      %81 = vector.broadcast %cst_30 : f32 to vector<1x8xf32>
      %82 = arith.maximumf %80, %81 : vector<1x8xf32>
      %cst_31 = arith.constant 1.000000e+00 : f32
      %83 = vector.broadcast %cst_31 : f32 to vector<1x8xf32>
      %84 = arith.divf %83, %82 : vector<1x8xf32>
      %85 = vector.broadcast %79 : vector<8x1xf32> to vector<8x8xf32>
      %86 = arith.mulf %68, %85 : vector<8x8xf32>
      %87 = vector.broadcast %84 : vector<1x8xf32> to vector<8x8xf32>
      %88 = arith.mulf %86, %87 : vector<8x8xf32>
      %89 = arith.subf %44, %66 : vector<8x8xf32>
      %90 = arith.mulf %89, %89 : vector<8x8xf32>
      %91 = vector.shape_cast %90 : vector<8x8xf32> to vector<1x8x8xf32>
      %cst_32 = arith.constant dense<0.000000e+00> : vector<1xf32>
      %92 = vector.multi_reduction <add>, %91, %cst_32 [1, 2] : vector<1x8x8xf32> to vector<1xf32>
      %93 = vector.shape_cast %92 : vector<1xf32> to vector<1x1x1xf32>
      %94 = vector.extract %93[0, 0, 0] : f32 from vector<1x1x1xf32>
      %cst_33 = arith.constant 2.000000e+00 : f32
      %95 = arith.mulf %cst_33, %94 : f32
      %cst_34 = arith.constant 0.000000e+00 : f32
      %96 = arith.addf %cst_34, %95 : f32
      %97 = arith.subf %44, %88 : vector<8x8xf32>
      %98 = arith.mulf %97, %97 : vector<8x8xf32>
      %99 = vector.shape_cast %98 : vector<8x8xf32> to vector<1x8x8xf32>
      %cst_35 = arith.constant dense<0.000000e+00> : vector<1xf32>
      %100 = vector.multi_reduction <add>, %99, %cst_35 [1, 2] : vector<1x8x8xf32> to vector<1xf32>
      %101 = vector.shape_cast %100 : vector<1xf32> to vector<1x1x1xf32>
      %102 = vector.extract %101[0, 0, 0] : f32 from vector<1x1x1xf32>
      %cst_36 = arith.constant 2.000000e+00 : f32
      %103 = arith.mulf %cst_36, %102 : f32
      %104 = arith.addf %96, %103 : f32
      %105 = arith.subf %66, %88 : vector<8x8xf32>
      %106 = arith.mulf %105, %105 : vector<8x8xf32>
      %107 = vector.shape_cast %106 : vector<8x8xf32> to vector<1x8x8xf32>
      %cst_37 = arith.constant dense<0.000000e+00> : vector<1xf32>
      %108 = vector.multi_reduction <add>, %107, %cst_37 [1, 2] : vector<1x8x8xf32> to vector<1xf32>
      %109 = vector.shape_cast %108 : vector<1xf32> to vector<1x1x1xf32>
      %110 = vector.extract %109[0, 0, 0] : f32 from vector<1x1x1xf32>
      %cst_38 = arith.constant 2.000000e+00 : f32
      %111 = arith.mulf %cst_38, %110 : f32
      %112 = arith.addf %104, %111 : f32
      %cst_39 = arith.constant 6.400000e+01 : f32
      %113 = arith.divf %112, %cst_39 : f32
      %cst_40 = arith.constant 9.000000e+00 : f32
      %114 = arith.divf %113, %cst_40 : f32
      %c0_41 = arith.constant 0 : index
      %115 = memref.load %arg3[%c0_41] : memref<1xf32, #tpu.memory_space<smem>>
      memref.store %114, %arg3[%c0_41] : memref<1xf32, #tpu.memory_space<smem>>
    } else {
    }
    return
  }
  func.func @transform_0(%arg0: i32, %arg1: memref<4xi32, #tpu.memory_space<smem>>) -> (i32, i32) {
    %c0_i32 = arith.constant 0 : i32
    %c0_i32_0 = arith.constant 0 : i32
    return %c0_i32, %arg0 : i32, i32
  }
  func.func @transform_1(%arg0: i32, %arg1: memref<4xi32, #tpu.memory_space<smem>>) -> i32 {
    %c0_i32 = arith.constant 0 : i32
    %c0_i32_0 = arith.constant 0 : i32
    return %c0_i32 : i32
  }
}

</mosaic_0001>

<llo_original>
// kernel: rkd_loss.1
$region0: #{rkd_loss.1}
  #allocation0 [shape = 'u32[]', space=smem, size = 0x4, offset = 0x4, fixed_abs, tag = 'smem constant byte address 0x4 - core index']
  #allocation1 [shape = 'u32[144,128]{1,0:T(1,128)}', space=vmem, size = 0x12000, scoped, tag = 'internal scratch']
  #allocation2 [shape = 'f32[3,8,8]{2,1,0:T(8,128)}', space=vmem, size = 0x3000, scoped, tag = 'scratch operand']
  #allocation3 [shape = 's32[1]{0}', space=sflag, size = 0x4, scoped, tag = 'scoped memory for rkd_loss.1']
  #allocation4 [shape = 'u8[512]{0}', space=smem, size = 0x200, scoped, tag = 'prefetched SMEM operand 0']
  %s0 = inlined_call_operand.vmem [shape: s32[4], index: 0, kind: input, shape index: {}]
  %s1 = inlined_call_operand.vmem [shape: f32[8,512], index: 1, kind: input, shape index: {}]
  %s2 = inlined_call_operand.hbm [shape: f32[1], index: 2, kind: output, shape index: {}]
  %s3 = sld [smem:[#allocation0]]
  $region45: #{rkd_loss.1} parent=0
    _
  %s5 = ssub.s32 1, %s3
  %s6 = scalar_select 0, %s5, %s3
  %s7 = sshll.u32 %s0, 4
  %s8 = int_to_ptr.vmem [resolvable:$true] %s7
  %10 = dma.vmem_to_smem %s8, 16, [#allocation4], [#allocation3]
  %11 = dma.done [#allocation3], 16
  %12 = sfence
  $region1: #{rkd_loss.1} parent=0
    #allocation5 [shape = 'u8[512]{0}', space=smem, size = 0x200, scoped, tag = 'output window, operand 0, single buffered']
    #allocation6 [shape = 's32[2]{0}', space=sflag, size = 0x8, scoped, tag = 'scoped memory for rkd_loss.1']
    %13 = vsyncpa [#allocation6], 0
    loop: start=0, step=1, limit=6
    $region2: #{rkd_loss.1} parent=1 // loop_pre_header
      _
    $region3: #{rkd_loss.1} parent=1 // loop_header
      %s15 = sphi 0, %s19
      %p16 = scmp.ge.s32.totalorder %s15, 6
      %s25 = sphi 0, %s27
      %s28 = sphi 0, %s25
      %s29 = sphi 0, %s28
      %s45 = sphi 0, %s29
      %s49 = sphi 0, %s49
      %s51 = sphi 0, %s49
      %s52 = sphi 0, %s51
      %s66 = sphi 0, %s52
    $region4: #{rkd_loss.1} parent=1 // loop_header_branch
      %18 = sbr.rel (%p16) target = $region8
    $region5: #{rkd_loss.1} parent=1 // loop_body
      %s20 = ssub.s32 %s15, 1
      %s21 = ssub.s32 %s15, 2
      %s22 = sadd.s32 %s15, 1
      %s23 = ssub.s32 %s15, %s22
      %p24 = scmp.eq.s32.totalorder %s23, 0
      %s26 = sadd.s32 %s25, 1
      %s27 = scalar_select %p24, %s25, %s26
      %p30 = pneg %p24
      %p31 = scmp.eq.s32.totalorder %s15, 3
      %p32 = por %p30, %p31
      %p33 = scmp.ne.s32.totalorder %s25, %s28
      %p34 = scmp.eq.s32.totalorder %s15, 0
      %p35 = por %p33, %p34
      %p36 = scmp.ne.s32.totalorder %s25, %s28
      %p37 = scmp.eq.s32.totalorder %s20, 3
      %p38 = por %p36, %p37
      %p39 = scmp.ne.s32.totalorder %s28, %s29
      %p40 = scmp.eq.s32.totalorder %s20, 0
      %p41 = por %p39, %p40
      %p42 = scmp.ne.s32.totalorder %s28, %s29
      %p43 = scmp.eq.s32.totalorder %s21, 3
      %p44 = por %p42, %p43
      %p46 = scmp.ne.s32.totalorder %s29, %s45
      %p47 = scmp.eq.s32.totalorder %s21, 0
      %p48 = por %p46, %p47
      %s50 = sadd.s32 %s49, 1
      %p53 = scmp.eq.s32.totalorder %s15, 3
      %p54 = scmp.ne.s32.totalorder %s49, %s51
      %p55 = scmp.eq.s32.totalorder %s15, 0
      %p56 = por %p54, %p55
      %p57 = scmp.ne.s32.totalorder %s49, %s51
      %p58 = scmp.eq.s32.totalorder %s20, 3
      %p59 = por %p57, %p58
      %p60 = scmp.ne.s32.totalorder %s51, %s52
      %p61 = scmp.eq.s32.totalorder %s20, 0
      %p62 = por %p60, %p61
      %p63 = scmp.ne.s32.totalorder %s51, %s52
      %p64 = scmp.eq.s32.totalorder %s21, 3
      %p65 = por %p63, %p64
      %p67 = scmp.ne.s32.totalorder %s52, %s66
      %p68 = scmp.eq.s32.totalorder %s21, 0
      %p69 = por %p67, %p68
      %p70 = scmp.le.s32.totalorder 1, %s15
      %p71 = scmp.lt.s32.totalorder %s15, 5
      %p72 = pnand %p70, %p71
      %p73 = pneg %p72
      // Predicated region
      $region9: #{rkd_loss.1} parent=5 // pred_check
        _
      $region10: #{rkd_loss.1} parent=5 // pred_check_branch
        %75 = sbr.rel (%p72) target = $region12
      $region11: #{rkd_loss.1} parent=5 // pred_region
        %s76 = ssub.s32 %s15, 1
      $region12: #{rkd_loss.1} parent=5 // pred_fallthru
        _
      %p77 = scmp.lt.s32.totalorder %s15, 4
      // Predicated region
      $region13: #{rkd_loss.1} parent=5 // pred_check
        %p78 = pneg %p77
      $region14: #{rkd_loss.1} parent=5 // pred_check_branch
        %80 = sbr.rel (%p78) target = $region16
      $region15: #{rkd_loss.1} parent=5 // pred_region
        // Predicated region
        $region17: #{rkd_loss.1} parent=15 // pred_check
          %p81 = pneg %p35
        $region18: #{rkd_loss.1} parent=15 // pred_check_branch
          %83 = sbr.rel (%p81) target = $region20
        $region19: #{rkd_loss.1} parent=15 // pred_region
          %p84 = scmp.lt.s32.totalorder %s15, 3
          %s85 = scalar_select %p84, %s15, 3
          %s86 = smul.addr %s85, 8
          %s87 = scalar_lea.vmem %s1, %s86
        $region20: #{rkd_loss.1} parent=15 // pred_fallthru
          _
      $region16: #{rkd_loss.1} parent=5 // pred_fallthru
        _
      %p88 = scmp.le.s32.totalorder 1, %s15
      %p89 = scmp.lt.s32.totalorder %s15, 5
      %p90 = pnand %p88, %p89
      %p91 = pneg %p90
      // Predicated region
      $region21: #{rkd_loss.1} parent=5 // pred_check
        _
      $region22: #{rkd_loss.1} parent=5 // pred_check_branch
        %93 = sbr.rel (%p90) target = $region24
      $region23: #{rkd_loss.1} parent=5 // pred_region
        %s94 = ssub.s32 %s15, 1
        %p95 = scmp.lt.s32.totalorder %s20, 3
        %s96 = scalar_select %p95, %s20, 3
        %s97 = smul.addr %s96, 8
        %s98 = scalar_lea.vmem %s1, %s97
        %p99 = pneg %p41
        %p100 = pneg %p38
        %p101 = pneg %p62
        %p102 = pneg %p59
        %p103 = scmp.lt.s32.totalorder %s20, 3
        %s104 = scalar_select %p103, %s20, 3
        %s105 = smul.addr %s104, 8
        %s106 = scalar_lea.vmem %s1, %s105
        %p107 = scmp.eq.s32.totalorder %s20, 0
        // Predicated region
        $region25: #{rkd_loss.1} parent=23 // pred_check
          %p108 = pneg %p107
        $region26: #{rkd_loss.1} parent=23 // pred_check_branch
          %110 = sbr.rel (%p108) target = $region28
        $region27: #{rkd_loss.1} parent=23 // pred_region
          %vm111 = vcmask 64512
          %112 = vst.msk [vmem:[#allocation2] sm:$0xff] %vm111, 0.0
          %113 = vst.msk [vmem:[#allocation2 + $0x8] sm:$0xff] %vm111, 0.0
          %114 = vst.msk [vmem:[#allocation2 + $0x10] sm:$0xff] %vm111, 0.0
        $region28: #{rkd_loss.1} parent=23 // pred_fallthru
          _
        %v115 = vld [vmem:[%s106] sm:$0xff]
        %116 = vmatprep.subr.mxu0 0.0
        %117 = vmatpush1.xpose.msra.mxu0 %v115
        %118 = vmatprep.subr.mxu0 0.0
        %119 = vmatpush1.xpose.msra.mxu0 0.0
        %120 = vmatprep.subr.mxu0 0.0
        %121 = vmatpush1.xpose.msra.mxu0 0.0
        %122 = vmatprep.subr.mxu0 0.0
        %123 = vmatpush1.xpose.msra.mxu0 0.0
        %124 = vmatprep.subr.mxu0 0.0
        %125 = vmatpush1.xpose.msra.mxu0 0.0
        %126 = vmatprep.subr.mxu0 0.0
        %127 = vmatpush1.xpose.msra.mxu0 0.0
        %128 = vmatprep.subr.mxu0 0.0
        %129 = vmatpush1.xpose.msra.mxu0 0.0
        %130 = vmatprep.subr.mxu0 0.0
        %131 = vmatpush1.xpose.msra.mxu0 0.0
        %132 = vmatprep.subr.mxu0 0.0
        %133 = vmatpush1.xpose.msra.mxu0 0.0
        %134 = vmatprep.subr.mxu0 0.0
        %135 = vmatpush1.xpose.msra.mxu0 0.0
        %136 = vmatprep.subr.mxu0 0.0
        %137 = vmatpush1.xpose.msra.mxu0 0.0
        %138 = vmatprep.subr.mxu0 0.0
        %139 = vmatpush1.xpose.msra.mxu0 0.0
        %140 = vmatprep.subr.mxu0 0.0
        %141 = vmatpush1.xpose.msra.mxu0 0.0
        %142 = vmatprep.subr.mxu0 0.0
        %143 = vmatpush1.xpose.msra.mxu0 0.0
        %144 = vmatprep.subr.mxu0 0.0
        %145 = vmatpush1.xpose.msra.mxu0 0.0
        %146 = vmatprep.subr.mxu0 0.0
        %147 = vmatpush1.xpose.msra.mxu0 0.0
        %148 = vmatprep.subr.mxu0 0.0
        %149 = vmatpush1.xpose.msra.mxu0 0.0
        %150 = vmatprep.subr.mxu0 0.0
        %151 = vmatpush1.xpose.msra.mxu0 0.0
        %152 = vmatprep.subr.mxu0 0.0
        %153 = vmatpush1.xpose.msra.mxu0 0.0
        %154 = vmatprep.subr.mxu0 0.0
        %155 = vmatpush1.xpose.msra.mxu0 0.0
        %156 = vmatprep.subr.mxu0 0.0
        %157 = vmatpush1.xpose.msra.mxu0 0.0
        %158 = vmatprep.subr.mxu0 0.0
        %159 = vmatpush1.xpose.msra.mxu0 0.0
        %160 = vmatprep.subr.mxu0 0.0
        %161 = vmatpush1.xpose.msra.mxu0 0.0
        %162 = vmatprep.subr.mxu0 0.0
        %163 = vmatpush1.xpose.msra.mxu0 0.0
        %164 = vmatprep.subr.mxu0 0.0
        %165 = vmatpush1.xpose.msra.mxu0 0.0
        %166 = vmatprep.subr.mxu0 0.0
        %167 = vmatpush1.xpose.msra.mxu0 0.0
        %168 = vmatprep.subr.mxu0 0.0
        %169 = vmatpush1.xpose.msra.mxu0 0.0
        %170 = vmatprep.subr.mxu0 0.0
        %171 = vmatpush1.xpose.msra.mxu0 0.0
        %172 = vmatprep.subr.mxu0 0.0
        %173 = vmatpush1.xpose.msra.mxu0 0.0
        %174 = vmatprep.subr.mxu0 0.0
        %175 = vmatpush1.xpose.msra.mxu0 0.0
        %176 = vmatprep.subr.mxu0 0.0
        %177 = vmatpush1.xpose.msra.mxu0 0.0
        %178 = vmatprep.subr.mxu0 0.0
        %179 = vmatpush1.xpose.msra.mxu0 0.0
        %180 = vmatprep.mubr.f32.mxu0 0.0
        %181 = vmatmul.mubr.f32.gmra.mrb[0].mxu0 %v115
        %v182 = vpop.f32.mrb[0].mxu0
        %v183 = vadd.f32 0.0, %v182
        %v184 = vpop.f32.mrb[0].mxu0
        %185 = vdwg.mxu0
        %s186 = sld [smem:[#allocation4 + %s20]]
        %s187 = smul.u32 %s186, 8
        %s188 = scalar_lea.vmem [#allocation2], %s187
        %v189 = vld [vmem:[%s188] sm:$0xff]
        %v190 = vadd.f32 %v189, %v183
        %vm191 = vcmask 64512
        %192 = vst.msk [vmem:[%s188] sm:$0xff] %vm191, %v190
        %p193 = scmp.eq.s32.totalorder %s20, 3
        // Predicated region
        $region29: #{rkd_loss.1} parent=23 // pred_check
          %p194 = pneg %p193
        $region30: #{rkd_loss.1} parent=23 // pred_check_branch
          %196 = sbr.rel (%p194) target = $region32
        $region31: #{rkd_loss.1} parent=23 // pred_region
          %v197 = vlaneseq
          %v198 = vshrl.u32 %v197, 7
          %v199 = vlaneseq
          %v200 = vand.u32 %v199, 127
          %vm201 = vcmp.eq.s32.totalorder %v198, %v200
          %v202 = vsel %vm201, 1, 0
          %v203 = vcvt.s32.f32 %v202
          %v204 = vld [vmem:[#allocation2] sm:$0xff]
          %v205 = vmul.f32 %v204, %v203
          %v206 = vsel %vm191, %v205, 0.0
          %207 = vadd.xlane.f32.xlu0 %v206
          %v208 = vpop.xlane.xlu0 %207
          %v209 = vrot.slane %v206, 4
          %v210 = vadd.f32 %v206, %v209
          %v211 = vrot.slane %v210, 2
          %v212 = vadd.f32 %v210, %v211
          %v213 = vrot.slane %v212, 1
          %v214 = vadd.f32 %v212, %v213
          %v215 = vrsqrt.pop %v208
          %v216 = vmul.f32 %v208, %v215
          %vm217 = vcmp.eq.f32.partialorder %v208, inf
          %v218 = vsel %vm217, %v208, %v216
          %vm219 = vcmp.eq.f32.partialorder %v208, 0.0
          %v220 = vand.u32 %v208, 2147483648
          %v221 = vsel %vm219, %v220, %v218
          %v222 = vmax.f32 %v221, 1e-12
          %v223 = vrcp.pop %v222
          %v224 = vmul.f32 1.0, %v223
          %v225 = vrsqrt.pop %v214
          %v226 = vmul.f32 %v214, %v225
          %vm227 = vcmp.eq.f32.partialorder %v214, inf
          %v228 = vsel %vm227, %v214, %v226
          %vm229 = vcmp.eq.f32.partialorder %v214, 0.0
          %v230 = vand.u32 %v214, 2147483648
          %v231 = vsel %vm229, %v230, %v228
          %v232 = vmax.f32 %v231, 1e-12
          %v233 = vrcp.pop %v232
          %v234 = vmul.f32 1.0, %v233
          %v235 = vmul.f32 %v204, %v224
          %v236 = vmul.f32 %v235, %v234
          %s237 = scalar_lea.vmem [#allocation2], 8
          %v238 = vld [vmem:[%s237] sm:$0xff]
          %v239 = vmul.f32 %v238, %v203
          %v240 = vsel %vm191, %v239, 0.0
          %241 = vadd.xlane.f32.xlu0 %v240
          %v242 = vpop.xlane.xlu0 %241
          %v243 = vrot.slane %v240, 4
          %v244 = vadd.f32 %v240, %v243
          %v245 = vrot.slane %v244, 2
          %v246 = vadd.f32 %v244, %v245
          %v247 = vrot.slane %v246, 1
          %v248 = vadd.f32 %v246, %v247
          %v249 = vrsqrt.pop %v242
          %v250 = vmul.f32 %v242, %v249
          %vm251 = vcmp.eq.f32.partialorder %v242, inf
          %v252 = vsel %vm251, %v242, %v250
          %vm253 = vcmp.eq.f32.partialorder %v242, 0.0
          %v254 = vand.u32 %v242, 2147483648
          %v255 = vsel %vm253, %v254, %v252
          %v256 = vmax.f32 %v255, 1e-12
          %v257 = vrcp.pop %v256
          %v258 = vmul.f32 1.0, %v257
          %v259 = vrsqrt.pop %v248
          %v260 = vmul.f32 %v248, %v259
          %vm261 = vcmp.eq.f32.partialorder %v248, inf
          %v262 = vsel %vm261, %v248, %v260
          %vm263 = vcmp.eq.f32.partialorder %v248, 0.0
          %v264 = vand.u32 %v248, 2147483648
          %v265 = vsel %vm263, %v264, %v262
          %v266 = vmax.f32 %v265, 1e-12
          %v267 = vrcp.pop %v266
          %v268 = vmul.f32 1.0, %v267
          %v269 = vmul.f32 %v238, %v258
          %v270 = vmul.f32 %v269, %v268
          %s271 = scalar_lea.vmem [#allocation2], 16
          %v272 = vld [vmem:[%s271] sm:$0xff]
          %v273 = vmul.f32 %v272, %v203
          %v274 = vsel %vm191, %v273, 0.0
          %275 = vadd.xlane.f32.xlu0 %v274
          %v276 = vpop.xlane.xlu0 %275
          %v277 = vrot.slane %v274, 4
          %v278 = vadd.f32 %v274, %v277
          %v279 = vrot.slane %v278, 2
          %v280 = vadd.f32 %v278, %v279
          %v281 = vrot.slane %v280, 1
          %v282 = vadd.f32 %v280, %v281
          %v283 = vrsqrt.pop %v276
          %v284 = vmul.f32 %v276, %v283
          %vm285 = vcmp.eq.f32.partialorder %v276, inf
          %v286 = vsel %vm285, %v276, %v284
          %vm287 = vcmp.eq.f32.partialorder %v276, 0.0
          %v288 = vand.u32 %v276, 2147483648
          %v289 = vsel %vm287, %v288, %v286
          %v290 = vmax.f32 %v289, 1e-12
          %v291 = vrcp.pop %v290
          %v292 = vmul.f32 1.0, %v291
          %v293 = vrsqrt.pop %v282
          %v294 = vmul.f32 %v282, %v293
          %vm295 = vcmp.eq.f32.partialorder %v282, inf
          %v296 = vsel %vm295, %v282, %v294
          %vm297 = vcmp.eq.f32.partialorder %v282, 0.0
          %v298 = vand.u32 %v282, 2147483648
          %v299 = vsel %vm297, %v298, %v296
          %v300 = vmax.f32 %v299, 1e-12
          %v301 = vrcp.pop %v300
          %v302 = vmul.f32 1.0, %v301
          %v303 = vmul.f32 %v272, %v292
          %v304 = vmul.f32 %v303, %v302
          %v305 = vsub.f32 %v236, %v270
          %v306 = vmul.f32 %v305, %v305
          %v307 = vsel %vm191, %v306, 0.0
          %308 = vadd.xlane.f32.xlu0 %v307
          %v309 = vpop.xlane.xlu0 %308
          %v310 = vrot.slane %v309, 4
          %v311 = vadd.f32 %v309, %v310
          %v312 = vrot.slane %v311, 2
          %v313 = vadd.f32 %v311, %v312
          %v314 = vrot.slane %v313, 1
          %v315 = vadd.f32 %v313, %v314
          %s316 = vtos %v315
          %s317 = smul.f32 %s316, 2.0
          %s318 = sadd.f32 %s317, 0.0
          %v319 = vsub.f32 %v236, %v304
          %v320 = vmul.f32 %v319, %v319
          %v321 = vsel %vm191, %v320, 0.0
          %322 = vadd.xlane.f32.xlu0 %v321
          %v323 = vpop.xlane.xlu0 %322
          %v324 = vrot.slane %v323, 4
          %v325 = vadd.f32 %v323, %v324
          %v326 = vrot.slane %v325, 2
          %v327 = vadd.f32 %v325, %v326
          %v328 = vrot.slane %v327, 1
          %v329 = vadd.f32 %v327, %v328
          %s330 = vtos %v329
          %s331 = smul.f32 %s330, 2.0
          %s332 = sadd.f32 %s318, %s331
          %v333 = vsub.f32 %v270, %v304
          %v334 = vmul.f32 %v333, %v333
          %v335 = vsel %vm191, %v334, 0.0
          %336 = vadd.xlane.f32.xlu0 %v335
          %v337 = vpop.xlane.xlu0 %336
          %v338 = vrot.slane %v337, 4
          %v339 = vadd.f32 %v337, %v338
          %v340 = vrot.slane %v339, 2
          %v341 = vadd.f32 %v339, %v340
          %v342 = vrot.slane %v341, 1
          %v343 = vadd.f32 %v341, %v342
          %s344 = vtos %v343
          %s345 = smul.f32 %s344, 2.0
          %s346 = sadd.f32 %s332, %s345
          %v347 = vrcp.pop 64.0
          %s348 = vtos %v347
          %s349 = smul.f32 %s346, %s348
          %v350 = vrcp.pop 9.0
          %s351 = vtos %v350
          %s352 = smul.f32 %s349, %s351
          %s353 = scalar_lea.smem [#allocation5], 0
          %354 = sst [smem:[%s353]] %s352
        $region32: #{rkd_loss.1} parent=23 // pred_fallthru
          _
        // Predicated region
        $region33: #{rkd_loss.1} parent=23 // pred_check
          %p355 = pneg %p59
        $region34: #{rkd_loss.1} parent=23 // pred_check_branch
          %357 = sbr.rel (%p355) target = $region36
        $region35: #{rkd_loss.1} parent=23 // pred_region
          %s359 = ssub.s32 16, 16
          %360 = vsyncadd [#allocation6], %s359
          %363 = dma.smem_to_hbm [#allocation5], 16, %s2, [#allocation6]
        $region36: #{rkd_loss.1} parent=23 // pred_fallthru
          _
        // Predicated region
        $region37: #{rkd_loss.1} parent=23 // pred_check
          %p364 = pneg %p59
        $region38: #{rkd_loss.1} parent=23 // pred_check_branch
          %366 = sbr.rel (%p364) target = $region40
        $region39: #{rkd_loss.1} parent=23 // pred_region
          %367 = dma.done [#allocation6], 16
        $region40: #{rkd_loss.1} parent=23 // pred_fallthru
          _
        %368 = sfence
      $region24: #{rkd_loss.1} parent=5 // pred_fallthru
        _
      %p369 = scmp.le.s32.totalorder 2, %s15
      // Predicated region
      $region41: #{rkd_loss.1} parent=5 // pred_check
        %p370 = pneg %p369
      $region42: #{rkd_loss.1} parent=5 // pred_check_branch
        %372 = sbr.rel (%p370) target = $region44
      $region43: #{rkd_loss.1} parent=5 // pred_region
        %s373 = ssub.s32 %s15, 2
      $region44: #{rkd_loss.1} parent=5 // pred_fallthru
        _
    $region6: #{rkd_loss.1} parent=1 // loop_footer
      %s19 = sadd.s32 1, %s15
    $region7: #{rkd_loss.1} parent=1 // loop_footer_branch
      %14 = sbr.rel target = $region3
    $region8: #{rkd_loss.1} parent=1 // loop_exit
      _
    %374 = vsyncpa [#allocation6], 1
    %s375 = scalar_lea.sflag [#allocation6], 1
    %376 = vsyncpa %s375, 1

</llo_original>
